<compile_context>
chip_gen: v7x
topology: tpu7x:2x2x1
jax: 0.10.0
libtpu: 0.0.40
codegen_flags: <defaults>
</compile_context>

<pallas_src>
import jax
import jax.numpy as jnp
from jax import lax
from jax.experimental import pallas as pl
from jax.experimental.pallas import tpu as pltpu

MAX_TILE_B = 4096     # upper bound on the batch tile (lane dim of all hidden activations)
SUBLANE = 8


def _round_up(x, m):
    return ((x + m - 1) // m) * m


def _choose_tile_b(batch, max_tile=MAX_TILE_B):
    """Pick the batch tile.

    * one tile covering the whole (8-padded) batch when the batch is small,
    * otherwise lane-aligned (multiple-of-128) tiles, keeping >=2 grid steps so the
      "parallel" grid axis can give work to both TensorCores on v7x.
    """
    bp8 = _round_up(batch, SUBLANE)
    if bp8 < 2048:
        return bp8                       # single tile; block == full array on the lane axis
    return min(max_tile, _round_up(pl.cdiv(bp8, 2), 128))


def mlp_policy_kernel(obs_ref, act_ref,
                      w1_ref, b1_ref, w2_ref, b2_ref, w3_ref, b3_ref,
                      out_ref):
    """One batch tile: MLP -> stable log_softmax -> gather(actions).

    Hidden activations live transposed, (hidden, TILE_B): the batch is the lane axis, so
    the per-example scalar result lands lane-dense in out_ref (1, TILE_B) -> unmasked vst.
    """
    x = obs_ref[...].astype(jnp.bfloat16)                        # (TB, obs_dim), natural layout

    # Layer 1: contract obs_dim of w1 (h1, obs_dim) with obs_dim of x (TB, obs_dim) -> (h1, TB).
    h = lax.dot_general(w1_ref[...], x,
                        dimension_numbers=(((1,), (1,)), ((), ())),
                        preferred_element_type=jnp.float32)
    h = jnp.tanh(h.astype(jnp.bfloat16) + b1_ref[...])           # bf16 epilogue, stays bf16

    # Layer 2: Linear + Tanh (bf16 MXU matmul, f32 accumulate, bf16 epilogue).
    h = jnp.dot(w2_ref[...], h, preferred_element_type=jnp.float32)
    h = jnp.tanh(h.astype(jnp.bfloat16) + b2_ref[...])

    # Output layer: logits^T (act_dim, TB), kept in f32 for the log-softmax.
    logits = jnp.dot(w3_ref[...], h, preferred_element_type=jnp.float32) + b3_ref[...]

    # Numerically stable log-sum-exp over act_dim (sublane axis).
    m = jnp.max(logits, axis=0, keepdims=True)                    # (1, TB)
    lse = m + jnp.log(jnp.sum(jnp.exp(logits - m), axis=0, keepdims=True))

    # Gather the chosen-action logit per column: one-hot select + sublane reduce
    # (the full log-prob matrix is never materialized).
    a = act_ref[...]                                              # (1, TB) int32
    row = lax.broadcasted_iota(jnp.int32, logits.shape, 0)        # (act_dim, TB)
    logit_a = jnp.sum(jnp.where(row == a, logits, 0.0), axis=0, keepdims=True)

    out_ref[...] = logit_a - lse                                  # (1, TB)


def prepare_params(params):
    """Pad hidden widths to a multiple of 8 sublanes and cast weights/biases to bf16.

    Hoisted out of the per-step forward: call once, reuse across the RL loop.
    Weights keep torch nn.Linear layout (out_features, in_features); biases become
    (out_features, 1) columns.  Zero padding is numerically inert (tanh(0)=0 and zero
    weight rows/cols contribute nothing); act_dim is deliberately NOT padded.
    """
    (w1, b1), (w2, b2), (w3, b3) = params
    h1, obs_dim = w1.shape
    h2 = w2.shape[0]
    act_dim = w3.shape[0]
    h1p = _round_up(h1, SUBLANE)
    h2p = _round_up(h2, SUBLANE)

    w1p = jnp.zeros((h1p, obs_dim), jnp.float32).at[:h1, :].set(w1).astype(jnp.bfloat16)
    b1p = jnp.zeros((h1p, 1), jnp.float32).at[:h1, 0].set(b1).astype(jnp.bfloat16)
    w2p = jnp.zeros((h2p, h1p), jnp.float32).at[:h2, :h1].set(w2).astype(jnp.bfloat16)
    b2p = jnp.zeros((h2p, 1), jnp.float32).at[:h2, 0].set(b2).astype(jnp.bfloat16)
    w3p = jnp.zeros((act_dim, h2p), jnp.float32).at[:, :h2].set(w3).astype(jnp.bfloat16)
    b3p = b3.astype(jnp.float32).reshape(act_dim, 1)              # f32 logits bias
    return (w1p, b1p, w2p, b2p, w3p, b3p)


def mlp_policy_forward(obs, actions, prepared, max_tile_b=MAX_TILE_B):
    """Batch-tiled pallas_call; `prepared` = prepare_params(params) (cached by caller)."""
    B, obs_dim = obs.shape
    w1p, b1p, w2p, b2p, w3p, b3p = prepared
    h1p, h2p, act_dim = w1p.shape[0], w2p.shape[0], w3p.shape[0]

    tile_b = _choose_tile_b(B, max_tile_b)
    n_tiles = pl.cdiv(B, tile_b)
    b_pad = n_tiles * tile_b

    # obs stays in its natural (B, obs_dim) layout -> no wrapper transpose copy.
    # Pad rows only when the tile does not divide the batch; tail columns are discarded.
    obs_in = obs if b_pad == B else jnp.pad(obs, ((0, b_pad - B), (0, 0)))
    act_i32 = actions.astype(jnp.int32)
    act_row = (act_i32 if b_pad == B else jnp.pad(act_i32, (0, b_pad - B))).reshape(1, b_pad)

    flops = 2 * b_pad * (obs_dim * h1p + h1p * h2p + h2p * act_dim)
    transcendentals = b_pad * (h1p + h2p + act_dim + 1)           # tanh x2 layers, exp, log
    bytes_accessed = int(
        obs_in.size * obs_in.dtype.itemsize + act_row.size * 4 + b_pad * 4
        + (w1p.size + w2p.size + w3p.size) * 2                    # bf16 weights
        + (b1p.size + b2p.size) * 2 + b3p.size * 4)               # biases

    def wspec(shape):
        return pl.BlockSpec(shape, lambda i: (0, 0))              # VMEM-resident across grid

    out = pl.pallas_call(
        mlp_policy_kernel,
        out_shape=jax.ShapeDtypeStruct((1, b_pad), jnp.float32),
        grid=(n_tiles,),
        in_specs=[
            pl.BlockSpec((tile_b, obs_dim), lambda i: (i, 0)),    # obs slab, natural layout
            pl.BlockSpec((1, tile_b), lambda i: (0, i)),          # actions (lane-dense)
            wspec((h1p, obs_dim)), wspec((h1p, 1)),
            wspec((h2p, h1p)), wspec((h2p, 1)),
            wspec((act_dim, h2p)), wspec((act_dim, 1)),
        ],
        out_specs=pl.BlockSpec((1, tile_b), lambda i: (0, i)),    # lane-dense, unmasked stores
        compiler_params=pltpu.CompilerParams(
            dimension_semantics=("parallel",)),
        cost_estimate=pl.CostEstimate(
            flops=int(flops),
            transcendentals=int(transcendentals),
            bytes_accessed=bytes_accessed),
    )(obs_in, act_row, w1p, b1p, w2p, b2p, w3p, b3p)

    return out[0, :B]


def init_linear(key, in_dim, out_dim):
    """Deterministic init mimicking torch.nn.Linear: U(-1/sqrt(in), 1/sqrt(in))."""
    kw, kb = jax.random.split(key)
    bound = 1.0 / jnp.sqrt(jnp.float32(in_dim))
    w = jax.random.uniform(kw, (out_dim, in_dim), jnp.float32, -bound, bound)  # torch (out, in)
    b = jax.random.uniform(kb, (out_dim,), jnp.float32, -bound, bound)
    return w, b


def reference_forward(obs, actions, params):
    """Pure-f32 reference with the exact module semantics (torch-layout weights)."""
    (w1, b1), (w2, b2), (w3, b3) = params
    h = jnp.tanh(obs @ w1.T + b1)
    h = jnp.tanh(h @ w2.T + b2)
    logits = h @ w3.T + b3
    logp = jax.nn.log_softmax(logits, axis=-1)
    return logp[jnp.arange(obs.shape[0]), actions]


def reference_forward_matched(obs, actions, prepared):
    """Reference matching the kernel's bf16-weight / bf16-epilogue / f32-softmax path."""
    w1p, b1p, w2p, b2p, w3p, b3p = prepared
    x = obs.astype(jnp.bfloat16)
    h = lax.dot_general(w1p, x, dimension_numbers=(((1,), (1,)), ((), ())),
                        preferred_element_type=jnp.float32)
    h = jnp.tanh(h.astype(jnp.bfloat16) + b1p)
    h = jnp.dot(w2p, h, preferred_element_type=jnp.float32)
    h = jnp.tanh(h.astype(jnp.bfloat16) + b2p)
    logits = jnp.dot(w3p, h, preferred_element_type=jnp.float32) + b3p
    logp = jax.nn.log_softmax(logits, axis=0)
    return logp[actions, jnp.arange(obs.shape[0])]


if __name__ == "__main__":
    # Small shapes consistent with MLPPolicy(obs_dim, act_dim, hidden_sizes, nn.Tanh)
    batch, obs_dim, act_dim = 8, 16, 8
    hidden_sizes = (32, 32)

    key = jax.random.PRNGKey(0)
    k_obs, k_act, k1, k2, k3 = jax.random.split(key, 5)

    obs = jax.random.normal(k_obs, (batch, obs_dim), jnp.float32)
    actions = jax.random.randint(k_act, (batch,), 0, act_dim, jnp.int32)

    params = (
        init_linear(k1, obs_dim, hidden_sizes[0]),
        init_linear(k2, hidden_sizes[0], hidden_sizes[1]),
        init_linear(k3, hidden_sizes[1], act_dim),
    )
    prepared = prepare_params(params)   # hoisted: pay the pad/cast once per policy update

    logp_a = mlp_policy_forward(obs, actions, prepared)
    jax.block_until_ready(logp_a)

    # Check against a precision-matched (bf16 weights / bf16 epilogue) reference, and
    # loosely against the true f32 module semantics (bf16 rounding only).
    ref_matched = reference_forward_matched(obs, actions, prepared)
    ref_f32 = reference_forward(obs, actions, params)
    assert jnp.allclose(logp_a, ref_matched, atol=2e-2, rtol=2e-2), (logp_a, ref_matched)
    assert jnp.allclose(logp_a, ref_f32, atol=6e-2, rtol=6e-2), (logp_a, ref_f32)

    print("KERNEL_OK")
</pallas_src>

<mosaic_0001>
module attributes {stable_mosaic.version = 11 : i64} {
  func.func @mlp_policy_kernel(%arg0: i32, %arg1: memref<8x16xf32, #tpu.memory_space<vmem>>, %arg2: memref<1x8xi32, #tpu.memory_space<vmem>>, %arg3: memref<32x16xbf16, #tpu.memory_space<vmem>>, %arg4: memref<32x1xbf16, #tpu.memory_space<vmem>>, %arg5: memref<32x32xbf16, #tpu.memory_space<vmem>>, %arg6: memref<32x1xbf16, #tpu.memory_space<vmem>>, %arg7: memref<8x32xbf16, #tpu.memory_space<vmem>>, %arg8: memref<8x1xf32, #tpu.memory_space<vmem>>, %arg9: memref<1x8xf32, #tpu.memory_space<vmem>>) attributes {dimension_semantics = [#tpu.dimension_semantics<parallel>], iteration_bounds = array<i64: 1>, scalar_prefetch = 0 : i64, scratch_operands = 0 : i64, tpu.core_type = #tpu.core_type<tc>, window_params = [{transform_indices = @transform_0, window_bounds = array<i64: 8, 16>}, {transform_indices = @transform_1, window_bounds = array<i64: 1, 8>}, {pipeline_mode = #tpu.pipeline_mode<synchronous>, transform_indices = @transform_2, window_bounds = array<i64: 32, 16>}, {pipeline_mode = #tpu.pipeline_mode<synchronous>, transform_indices = @transform_3, window_bounds = array<i64: 32, 1>}, {pipeline_mode = #tpu.pipeline_mode<synchronous>, transform_indices = @transform_4, window_bounds = array<i64: 32, 32>}, {pipeline_mode = #tpu.pipeline_mode<synchronous>, transform_indices = @transform_5, window_bounds = array<i64: 32, 1>}, {pipeline_mode = #tpu.pipeline_mode<synchronous>, transform_indices = @transform_6, window_bounds = array<i64: 8, 32>}, {pipeline_mode = #tpu.pipeline_mode<synchronous>, transform_indices = @transform_7, window_bounds = array<i64: 8, 1>}, {transform_indices = @transform_8, window_bounds = array<i64: 1, 8>}]} {
    %c0 = arith.constant 0 : index
    %c0_0 = arith.constant 0 : index
    %0 = vector.load %arg1[%c0, %c0_0] : memref<8x16xf32, #tpu.memory_space<vmem>>, vector<8x16xf32>
    %1 = arith.truncf %0 : vector<8x16xf32> to vector<8x16xbf16>
    %c0_1 = arith.constant 0 : index
    %c0_2 = arith.constant 0 : index
    %2 = vector.load %arg3[%c0_1, %c0_2] : memref<32x16xbf16, #tpu.memory_space<vmem>>, vector<32x16xbf16>
    %cst = arith.constant dense<0.000000e+00> : vector<32x8xf32>
    %3 = tpu.matmul %2, %1, %cst {dimension_numbers = #tpu.dot_dimension_numbers<[1], [1], [0], [0], [0, 0, 1, 0], [], []>} : vector<32x16xbf16>, vector<8x16xbf16>, vector<32x8xf32> -> vector<32x8xf32>
    %4 = arith.truncf %3 : vector<32x8xf32> to vector<32x8xbf16>
    %c0_3 = arith.constant 0 : index
    %c0_4 = arith.constant 0 : index
    %5 = vector.load %arg4[%c0_3, %c0_4] : memref<32x1xbf16, #tpu.memory_space<vmem>>, vector<32x1xbf16>
    %6 = vector.broadcast %5 : vector<32x1xbf16> to vector<32x8xbf16>
    %7 = arith.addf %4, %6 : vector<32x8xbf16>
    %8 = math.tanh %7 : vector<32x8xbf16>
    %c0_5 = arith.constant 0 : index
    %c0_6 = arith.constant 0 : index
    %9 = vector.load %arg5[%c0_5, %c0_6] : memref<32x32xbf16, #tpu.memory_space<vmem>>, vector<32x32xbf16>
    %cst_7 = arith.constant dense<0.000000e+00> : vector<32x8xf32>
    %10 = tpu.matmul %9, %8, %cst_7 {dimension_numbers = #tpu.dot_dimension_numbers<[1], [0], [0], [1], [0, 0, 1, 1], [], []>} : vector<32x32xbf16>, vector<32x8xbf16>, vector<32x8xf32> -> vector<32x8xf32>
    %11 = arith.truncf %10 : vector<32x8xf32> to vector<32x8xbf16>
    %c0_8 = arith.constant 0 : index
    %c0_9 = arith.constant 0 : index
    %12 = vector.load %arg6[%c0_8, %c0_9] : memref<32x1xbf16, #tpu.memory_space<vmem>>, vector<32x1xbf16>
    %13 = vector.broadcast %12 : vector<32x1xbf16> to vector<32x8xbf16>
    %14 = arith.addf %11, %13 : vector<32x8xbf16>
    %15 = math.tanh %14 : vector<32x8xbf16>
    %c0_10 = arith.constant 0 : index
    %c0_11 = arith.constant 0 : index
    %16 = vector.load %arg7[%c0_10, %c0_11] : memref<8x32xbf16, #tpu.memory_space<vmem>>, vector<8x32xbf16>
    %cst_12 = arith.constant dense<0.000000e+00> : vector<8x8xf32>
    %17 = tpu.matmul %16, %15, %cst_12 {dimension_numbers = #tpu.dot_dimension_numbers<[1], [0], [0], [1], [0, 0, 1, 1], [], []>} : vector<8x32xbf16>, vector<32x8xbf16>, vector<8x8xf32> -> vector<8x8xf32>
    %c0_13 = arith.constant 0 : index
    %c0_14 = arith.constant 0 : index
    %18 = vector.load %arg8[%c0_13, %c0_14] : memref<8x1xf32, #tpu.memory_space<vmem>>, vector<8x1xf32>
    %19 = vector.broadcast %18 : vector<8x1xf32> to vector<8x8xf32>
    %20 = arith.addf %17, %19 : vector<8x8xf32>
    %cst_15 = arith.constant dense<0xFF800000> : vector<8xf32>
    %21 = vector.multi_reduction <maximumf>, %20, %cst_15 [0] : vector<8x8xf32> to vector<8xf32>
    %22 = vector.shape_cast %21 : vector<8xf32> to vector<1x8xf32>
    %23 = vector.broadcast %22 : vector<1x8xf32> to vector<8x8xf32>
    %24 = arith.subf %20, %23 : vector<8x8xf32>
    %25 = math.exp %24 : vector<8x8xf32>
    %cst_16 = arith.constant dense<0.000000e+00> : vector<8xf32>
    %26 = vector.multi_reduction <add>, %25, %cst_16 [0] : vector<8x8xf32> to vector<8xf32>
    %27 = vector.shape_cast %26 : vector<8xf32> to vector<1x8xf32>
    %28 = math.log %27 : vector<1x8xf32>
    %29 = arith.addf %22, %28 : vector<1x8xf32>
    %c0_17 = arith.constant 0 : index
    %c0_18 = arith.constant 0 : index
    %30 = vector.load %arg2[%c0_17, %c0_18] : memref<1x8xi32, #tpu.memory_space<vmem>>, vector<1x8xi32>
    %31 = tpu.iota {dimensions = array<i32: 0>} : vector<8x8xi32>
    %32 = vector.broadcast %30 : vector<1x8xi32> to vector<8x8xi32>
    %33 = arith.cmpi eq, %31, %32 : vector<8x8xi32>
    %cst_19 = arith.constant 0.000000e+00 : f32
    %34 = vector.broadcast %cst_19 : f32 to vector<8x8xf32>
    %35 = arith.select %33, %20, %34 : vector<8x8xi1>, vector<8x8xf32>
    %cst_20 = arith.constant dense<0.000000e+00> : vector<8xf32>
    %36 = vector.multi_reduction <add>, %35, %cst_20 [0] : vector<8x8xf32> to vector<8xf32>
    %37 = vector.shape_cast %36 : vector<8xf32> to vector<1x8xf32>
    %38 = arith.subf %37, %29 : vector<1x8xf32>
    %c0_21 = arith.constant 0 : index
    %c0_22 = arith.constant 0 : index
    %39 = vector.load %arg9[%c0_21, %c0_22] : memref<1x8xf32, #tpu.memory_space<vmem>>, vector<1x8xf32>
    tpu.vector_store %arg9[%c0_21, %c0_22], %38 {strides = array<i32>} : memref<1x8xf32, #tpu.memory_space<vmem>>, vector<1x8xf32>,
    return
  }
  func.func @transform_0(%arg0: i32) -> (i32, i32) {
    %c0_i32 = arith.constant 0 : i32
    %c0_i32_0 = arith.constant 0 : i32
    return %arg0, %c0_i32 : i32, i32
  }
  func.func @transform_1(%arg0: i32) -> (i32, i32) {
    %c0_i32 = arith.constant 0 : i32
    %c0_i32_0 = arith.constant 0 : i32
    return %c0_i32, %arg0 : i32, i32
  }
  func.func @transform_2(%arg0: i32) -> (i32, i32) {
    %c0_i32 = arith.constant 0 : i32
    %c0_i32_0 = arith.constant 0 : i32
    %c0_i32_1 = arith.constant 0 : i32
    return %c0_i32, %c0_i32_0 : i32, i32
  }
  func.func @transform_3(%arg0: i32) -> (i32, i32) {
    %c0_i32 = arith.constant 0 : i32
    %c0_i32_0 = arith.constant 0 : i32
    %c0_i32_1 = arith.constant 0 : i32
    return %c0_i32, %c0_i32_0 : i32, i32
  }
  func.func @transform_4(%arg0: i32) -> (i32, i32) {
    %c0_i32 = arith.constant 0 : i32
    %c0_i32_0 = arith.constant 0 : i32
    %c0_i32_1 = arith.constant 0 : i32
    return %c0_i32, %c0_i32_0 : i32, i32
  }
  func.func @transform_5(%arg0: i32) -> (i32, i32) {
    %c0_i32 = arith.constant 0 : i32
    %c0_i32_0 = arith.constant 0 : i32
    %c0_i32_1 = arith.constant 0 : i32
    return %c0_i32, %c0_i32_0 : i32, i32
  }
  func.func @transform_6(%arg0: i32) -> (i32, i32) {
    %c0_i32 = arith.constant 0 : i32
    %c0_i32_0 = arith.constant 0 : i32
    %c0_i32_1 = arith.constant 0 : i32
    return %c0_i32, %c0_i32_0 : i32, i32
  }
  func.func @transform_7(%arg0: i32) -> (i32, i32) {
    %c0_i32 = arith.constant 0 : i32
    %c0_i32_0 = arith.constant 0 : i32
    %c0_i32_1 = arith.constant 0 : i32
    return %c0_i32, %c0_i32_0 : i32, i32
  }
  func.func @transform_8(%arg0: i32) -> (i32, i32) {
    %c0_i32 = arith.constant 0 : i32
    %c0_i32_0 = arith.constant 0 : i32
    return %c0_i32, %arg0 : i32, i32
  }
}

</mosaic_0001>

<llo_original>
// kernel: tpu_custom_call.1
$region0: #{tpu_custom_call.1}
  #allocation0 [shape = 'u32[]', space=smem, size = 0x4, offset = 0x4, fixed_abs, tag = 'smem constant byte address 0x4 - core index']
  #allocation1 [shape = 'u32[144,128]{1,0:T(1,128)}', space=vmem, size = 0x12000, scoped, tag = 'internal scratch']
  %s0 = inlined_call_operand.vmem [shape: f32[8,16], index: 0, kind: input, shape index: {}]
  %s1 = inlined_call_operand.vmem [shape: s32[1,8], index: 1, kind: input, shape index: {}]
  %s2 = inlined_call_operand.vmem [shape: bf16[32,16], index: 2, kind: input, shape index: {}]
  %s3 = inlined_call_operand.vmem [shape: bf16[32,1], index: 3, kind: input, shape index: {}]
  %s4 = inlined_call_operand.vmem [shape: bf16[32,32], index: 4, kind: input, shape index: {}]
  %s5 = inlined_call_operand.vmem [shape: bf16[32,1], index: 5, kind: input, shape index: {}]
  %s6 = inlined_call_operand.vmem [shape: bf16[8,32], index: 6, kind: input, shape index: {}]
  %s7 = inlined_call_operand.vmem [shape: f32[8,1], index: 7, kind: input, shape index: {}]
  %s8 = inlined_call_operand.hbm [shape: f32[1,8], index: 8, kind: output, shape index: {}]
  %s9 = sld [smem:[#allocation0]]
  $region42: #{tpu_custom_call.1} parent=0
    _
  %s11 = ssub.s32 1, %s9
  %s12 = scalar_select 0, %s11, %s9
  $region1: #{tpu_custom_call.1} parent=0
    #allocation2 [shape = 'u8[512]{0}', space=vmem, size = 0x400, scoped, tag = 'output window, operand 0, single buffered']
    #allocation3 [shape = 's32[1]{0}', space=sflag, size = 0x4, scoped, tag = 'scoped memory for tpu_custom_call.1']
    %13 = vsyncpa [#allocation3], 0
    // Predicated region
    $region2: #{tpu_custom_call.1} parent=1 // pred_check
      _
    $region3: #{tpu_custom_call.1} parent=1 // pred_check_branch
      %15 = sbr.rel (0) target = $region5
    $region4: #{tpu_custom_call.1} parent=1 // pred_region
      _
    $region5: #{tpu_custom_call.1} parent=1 // pred_fallthru
      _
    // Predicated region
    $region6: #{tpu_custom_call.1} parent=1 // pred_check
      _
    $region7: #{tpu_custom_call.1} parent=1 // pred_check_branch
      %17 = sbr.rel (0) target = $region9
    $region8: #{tpu_custom_call.1} parent=1 // pred_region
      _
    $region9: #{tpu_custom_call.1} parent=1 // pred_fallthru
      _
    // Predicated region
    $region10: #{tpu_custom_call.1} parent=1 // pred_check
      _
    $region11: #{tpu_custom_call.1} parent=1 // pred_check_branch
      %19 = sbr.rel (0) target = $region13
    $region12: #{tpu_custom_call.1} parent=1 // pred_region
      _
    $region13: #{tpu_custom_call.1} parent=1 // pred_fallthru
      _
    // Predicated region
    $region14: #{tpu_custom_call.1} parent=1 // pred_check
      _
    $region15: #{tpu_custom_call.1} parent=1 // pred_check_branch
      %21 = sbr.rel (0) target = $region17
    $region16: #{tpu_custom_call.1} parent=1 // pred_region
      _
    $region17: #{tpu_custom_call.1} parent=1 // pred_fallthru
      _
    // Predicated region
    $region18: #{tpu_custom_call.1} parent=1 // pred_check
      _
    $region19: #{tpu_custom_call.1} parent=1 // pred_check_branch
      %23 = sbr.rel (0) target = $region21
    $region20: #{tpu_custom_call.1} parent=1 // pred_region
      _
    $region21: #{tpu_custom_call.1} parent=1 // pred_fallthru
      _
    // Predicated region
    $region22: #{tpu_custom_call.1} parent=1 // pred_check
      _
    $region23: #{tpu_custom_call.1} parent=1 // pred_check_branch
      %25 = sbr.rel (0) target = $region25
    $region24: #{tpu_custom_call.1} parent=1 // pred_region
      _
    $region25: #{tpu_custom_call.1} parent=1 // pred_fallthru
      _
    // Predicated region
    $region26: #{tpu_custom_call.1} parent=1 // pred_check
      _
    $region27: #{tpu_custom_call.1} parent=1 // pred_check_branch
      %27 = sbr.rel (0) target = $region29
    $region28: #{tpu_custom_call.1} parent=1 // pred_region
      _
    $region29: #{tpu_custom_call.1} parent=1 // pred_fallthru
      _
    // Predicated region
    $region30: #{tpu_custom_call.1} parent=1 // pred_check
      _
    $region31: #{tpu_custom_call.1} parent=1 // pred_check_branch
      %29 = sbr.rel (0) target = $region33
    $region32: #{tpu_custom_call.1} parent=1 // pred_region
      _
    $region33: #{tpu_custom_call.1} parent=1 // pred_fallthru
      _
    %v31 = vld [vmem:[%s0] sm:$0xff]
    %v32 = vpack.c.bf16 %v31, %v31
    %v33 = vld [vmem:[%s2] sm:$0xf]
    %v34 = vld [vmem:[%s2 + $0x4] sm:$0xf]
    %v35 = vld [vmem:[%s2 + $0x8] sm:$0xf]
    %v36 = vld [vmem:[%s2 + $0xc] sm:$0xf]
    %v41 = vunpack.c.l.b16 %v33
    %v42 = vunpack.c.l.b16 %v34
    %v43 = vunpack.c.l.b16 %v35
    %v44 = vunpack.c.l.b16 %v36
    %v45 = vpack.c.b16 %v42, %v41
    %v46 = vpack.c.b16 %v44, %v43
    %vm47 = vcmask 130048
    %v49 = vsel %vm47, %v45, 0
    %v52 = vsel %vm47, %v46, 0
    %v55 = vsel %vm47, %v32, 0
    %57 = vmatprep.subr.bf16.mxu0 0
    %58 = vmatpush1.bf16.xpose.msra.mxu0 %v55
    %59 = vmatprep.subr.bf16.mxu0 0
    %60 = vmatpush1.bf16.xpose.msra.mxu0 0
    %61 = vmatprep.subr.bf16.mxu0 0
    %62 = vmatpush1.bf16.xpose.msra.mxu0 0
    %63 = vmatprep.subr.bf16.mxu0 0
    %64 = vmatpush1.bf16.xpose.msra.mxu0 0
    %65 = vmatprep.subr.bf16.mxu0 0
    %66 = vmatpush1.bf16.xpose.msra.mxu0 0
    %67 = vmatprep.subr.bf16.mxu0 0
    %68 = vmatpush1.bf16.xpose.msra.mxu0 0
    %69 = vmatprep.subr.bf16.mxu0 0
    %70 = vmatpush1.bf16.xpose.msra.mxu0 0
    %71 = vmatprep.subr.bf16.mxu0 0
    %72 = vmatpush1.bf16.xpose.msra.mxu0 0
    %73 = vmatprep.subr.bf16.mxu0 0
    %74 = vmatpush1.bf16.xpose.msra.mxu0 0
    %75 = vmatprep.subr.bf16.mxu0 0
    %76 = vmatpush1.bf16.xpose.msra.mxu0 0
    %77 = vmatprep.subr.bf16.mxu0 0
    %78 = vmatpush1.bf16.xpose.msra.mxu0 0
    %79 = vmatprep.subr.bf16.mxu0 0
    %80 = vmatpush1.bf16.xpose.msra.mxu0 0
    %81 = vmatprep.subr.bf16.mxu0 0
    %82 = vmatpush1.bf16.xpose.msra.mxu0 0
    %83 = vmatprep.subr.bf16.mxu0 0
    %84 = vmatpush1.bf16.xpose.msra.mxu0 0
    %85 = vmatprep.subr.bf16.mxu0 0
    %86 = vmatpush1.bf16.xpose.msra.mxu0 0
    %87 = vmatprep.subr.bf16.mxu0 0
    %88 = vmatpush1.bf16.xpose.msra.mxu0 0
    %89 = vmatprep.mubr.bf16.mxu0 0
    %90 = vmatmul.mubr.bf16.gmra.mrb[0].mxu0 %v49
    %v91 = vpop.f32.mrb[0].mxu0
    %v92 = vadd.f32 0.0, %v91
    %v93 = vpop.f32.mrb[0].mxu0
    %v94 = vpop.f32.mrb[0].mxu0
    %v95 = vadd.f32 0.0, %v94
    %v96 = vpop.f32.mrb[0].mxu0
    %97 = vmatprep.mubr.bf16.mxu0 0
    %98 = vmatmul.mubr.bf16.gmra.mrb[0].mxu0 %v52
    %v99 = vpop.f32.mrb[0].mxu0
    %v100 = vadd.f32 0.0, %v99
    %v101 = vpop.f32.mrb[0].mxu0
    %v102 = vpop.f32.mrb[0].mxu0
    %v103 = vadd.f32 0.0, %v102
    %v104 = vpop.f32.mrb[0].mxu0
    %105 = vdwg.mxu0
    %v106 = vpack.c.bf16 %v95, %v92
    %v107 = vpack.c.bf16 %v103, %v100
    %v108 = vld [vmem:[%s3] sm:$0xf]
    %v109 = vld [vmem:[%s3 + $0x4] sm:$0xf]
    %v110 = vld [vmem:[%s3 + $0x8] sm:$0xf]
    %v111 = vld [vmem:[%s3 + $0xc] sm:$0xf]
    %113 = vset.pattern.permute.xlu0 0
    %114 = vperm.xlu0 %113, %v108
    %v115 = vpop.permute.xlu0 %114
    %v118 = vunpack.c.l.s4 839922192
    %v119 = vunpack.c.0.s8 %v118
    %v120 = vlaneseq
    %v121 = vshrl.u32 %v120, 7
    %v122 = vsub.s32 %v119, %v121
    %v123 = vrot.slane %v115, %v122
    %125 = vset.pattern.permute.xlu0 0
    %126 = vperm.xlu0 %125, %v109
    %v127 = vpop.permute.xlu0 %126
    %v130 = vunpack.c.l.s4 839922192
    %v131 = vunpack.c.0.s8 %v130
    %v132 = vlaneseq
    %v133 = vshrl.u32 %v132, 7
    %v134 = vsub.s32 %v131, %v133
    %v135 = vrot.slane %v127, %v134
    %137 = vset.pattern.permute.xlu0 0
    %138 = vperm.xlu0 %137, %v110
    %v139 = vpop.permute.xlu0 %138
    %v142 = vunpack.c.l.s4 839922192
    %v143 = vunpack.c.0.s8 %v142
    %v144 = vlaneseq
    %v145 = vshrl.u32 %v144, 7
    %v146 = vsub.s32 %v143, %v145
    %v147 = vrot.slane %v139, %v146
    %149 = vset.pattern.permute.xlu0 0
    %150 = vperm.xlu0 %149, %v111
    %v151 = vpop.permute.xlu0 %150
    %v154 = vunpack.c.l.s4 839922192
    %v155 = vunpack.c.0.s8 %v154
    %v156 = vlaneseq
    %v157 = vshrl.u32 %v156, 7
    %v158 = vsub.s32 %v155, %v157
    %v159 = vrot.slane %v151, %v158
    %v164 = vunpack.c.l.b16 %v123
    %v165 = vunpack.c.l.b16 %v135
    %v166 = vunpack.c.l.b16 %v147
    %v167 = vunpack.c.l.b16 %v159
    %v168 = vpack.c.b16 %v165, %v164
    %v169 = vpack.c.b16 %v167, %v166
    %v172 = vadd.bf16 %v106, %v168
    %v173 = vadd.bf16 %v107, %v169
    %v174 = vtanh.bf16.pop %v172
    %v175 = vtanh.bf16.pop %v173
    %v176 = vld [vmem:[%s4] sm:$0xf]
    %v177 = vld [vmem:[%s4 + $0x4] sm:$0xf]
    %v178 = vld [vmem:[%s4 + $0x8] sm:$0xf]
    %v179 = vld [vmem:[%s4 + $0xc] sm:$0xf]
    %v184 = vunpack.c.l.b16 %v176
    %v185 = vunpack.c.l.b16 %v177
    %v186 = vunpack.c.l.b16 %v178
    %v187 = vunpack.c.l.b16 %v179
    %v188 = vpack.c.b16 %v185, %v184
    %v189 = vpack.c.b16 %v187, %v186
    %vm190 = vcmask 261120
    %v192 = vsel %vm190, %v188, 0
    %v195 = vsel %vm190, %v189, 0
    %197 = vmatprep.subr.bf16.mxu0 0
    %198 = vmatpush1.bf16.msra.mxu0 %v174
    %199 = vmatprep.subr.bf16.mxu0 0
    %200 = vmatpush1.bf16.msra.mxu0 %v175
    %201 = vmatprep.subr.bf16.mxu0 0
    %202 = vmatpush1.bf16.msra.mxu0 0
    %203 = vmatprep.subr.bf16.mxu0 0
    %204 = vmatpush1.bf16.msra.mxu0 0
    %205 = vmatprep.subr.bf16.mxu0 0
    %206 = vmatpush1.bf16.msra.mxu0 0
    %207 = vmatprep.subr.bf16.mxu0 0
    %208 = vmatpush1.bf16.msra.mxu0 0
    %209 = vmatprep.subr.bf16.mxu0 0
    %210 = vmatpush1.bf16.msra.mxu0 0
    %211 = vmatprep.subr.bf16.mxu0 0
    %212 = vmatpush1.bf16.msra.mxu0 0
    %213 = vmatprep.subr.bf16.mxu0 0
    %214 = vmatpush1.bf16.msra.mxu0 0
    %215 = vmatprep.subr.bf16.mxu0 0
    %216 = vmatpush1.bf16.msra.mxu0 0
    %217 = vmatprep.subr.bf16.mxu0 0
    %218 = vmatpush1.bf16.msra.mxu0 0
    %219 = vmatprep.subr.bf16.mxu0 0
    %220 = vmatpush1.bf16.msra.mxu0 0
    %221 = vmatprep.subr.bf16.mxu0 0
    %222 = vmatpush1.bf16.msra.mxu0 0
    %223 = vmatprep.subr.bf16.mxu0 0
    %224 = vmatpush1.bf16.msra.mxu0 0
    %225 = vmatprep.subr.bf16.mxu0 0
    %226 = vmatpush1.bf16.msra.mxu0 0
    %227 = vmatprep.subr.bf16.mxu0 0
    %228 = vmatpush1.bf16.msra.mxu0 0
    %229 = vmatprep.mubr.bf16.mxu0 0
    %230 = vmatmul.mubr.bf16.gmra.mrb[0].mxu0 %v192
    %v231 = vpop.f32.mrb[0].mxu0
    %v232 = vadd.f32 0.0, %v231
    %v233 = vpop.f32.mrb[0].mxu0
    %v234 = vpop.f32.mrb[0].mxu0
    %v235 = vadd.f32 0.0, %v234
    %v236 = vpop.f32.mrb[0].mxu0
    %237 = vmatprep.mubr.bf16.mxu0 0
    %238 = vmatmul.mubr.bf16.gmra.mrb[0].mxu0 %v195
    %v239 = vpop.f32.mrb[0].mxu0
    %v240 = vadd.f32 0.0, %v239
    %v241 = vpop.f32.mrb[0].mxu0
    %v242 = vpop.f32.mrb[0].mxu0
    %v243 = vadd.f32 0.0, %v242
    %v244 = vpop.f32.mrb[0].mxu0
    %245 = vdwg.mxu0
    %v246 = vpack.c.bf16 %v235, %v232
    %v247 = vpack.c.bf16 %v243, %v240
    %v248 = vld [vmem:[%s5] sm:$0xf]
    %v249 = vld [vmem:[%s5 + $0x4] sm:$0xf]
    %v250 = vld [vmem:[%s5 + $0x8] sm:$0xf]
    %v251 = vld [vmem:[%s5 + $0xc] sm:$0xf]
    %253 = vset.pattern.permute.xlu0 0
    %254 = vperm.xlu0 %253, %v248
    %v255 = vpop.permute.xlu0 %254
    %v258 = vunpack.c.l.s4 839922192
    %v259 = vunpack.c.0.s8 %v258
    %v260 = vlaneseq
    %v261 = vshrl.u32 %v260, 7
    %v262 = vsub.s32 %v259, %v261
    %v263 = vrot.slane %v255, %v262
    %265 = vset.pattern.permute.xlu0 0
    %266 = vperm.xlu0 %265, %v249
    %v267 = vpop.permute.xlu0 %266
    %v270 = vunpack.c.l.s4 839922192
    %v271 = vunpack.c.0.s8 %v270
    %v272 = vlaneseq
    %v273 = vshrl.u32 %v272, 7
    %v274 = vsub.s32 %v271, %v273
    %v275 = vrot.slane %v267, %v274
    %277 = vset.pattern.permute.xlu0 0
    %278 = vperm.xlu0 %277, %v250
    %v279 = vpop.permute.xlu0 %278
    %v282 = vunpack.c.l.s4 839922192
    %v283 = vunpack.c.0.s8 %v282
    %v284 = vlaneseq
    %v285 = vshrl.u32 %v284, 7
    %v286 = vsub.s32 %v283, %v285
    %v287 = vrot.slane %v279, %v286
    %289 = vset.pattern.permute.xlu0 0
    %290 = vperm.xlu0 %289, %v251
    %v291 = vpop.permute.xlu0 %290
    %v294 = vunpack.c.l.s4 839922192
    %v295 = vunpack.c.0.s8 %v294
    %v296 = vlaneseq
    %v297 = vshrl.u32 %v296, 7
    %v298 = vsub.s32 %v295, %v297
    %v299 = vrot.slane %v291, %v298
    %v304 = vunpack.c.l.b16 %v263
    %v305 = vunpack.c.l.b16 %v275
    %v306 = vunpack.c.l.b16 %v287
    %v307 = vunpack.c.l.b16 %v299
    %v308 = vpack.c.b16 %v305, %v304
    %v309 = vpack.c.b16 %v307, %v306
    %v312 = vadd.bf16 %v246, %v308
    %v313 = vadd.bf16 %v247, %v309
    %v314 = vtanh.bf16.pop %v312
    %v315 = vtanh.bf16.pop %v313
    %v316 = vld [vmem:[%s6] sm:$0xf]
    %v317 = vld [vmem:[%s7] sm:$0xff]
    %319 = vset.pattern.permute.xlu0 0
    %320 = vperm.xlu0 %319, %v317
    %v321 = vpop.permute.xlu0 %320
    %v324 = vsel %vm190, %v316, 0
    %326 = vmatprep.subr.bf16.mxu0 0
    %327 = vmatpush1.bf16.msra.mxu0 %v314
    %328 = vmatprep.subr.bf16.mxu0 0
    %329 = vmatpush1.bf16.msra.mxu0 %v315
    %330 = vmatprep.subr.bf16.mxu0 0
    %331 = vmatpush1.bf16.msra.mxu0 0
    %332 = vmatprep.subr.bf16.mxu0 0
    %333 = vmatpush1.bf16.msra.mxu0 0
    %334 = vmatprep.subr.bf16.mxu0 0
    %335 = vmatpush1.bf16.msra.mxu0 0
    %336 = vmatprep.subr.bf16.mxu0 0
    %337 = vmatpush1.bf16.msra.mxu0 0
    %338 = vmatprep.subr.bf16.mxu0 0
    %339 = vmatpush1.bf16.msra.mxu0 0
    %340 = vmatprep.subr.bf16.mxu0 0
    %341 = vmatpush1.bf16.msra.mxu0 0
    %342 = vmatprep.subr.bf16.mxu0 0
    %343 = vmatpush1.bf16.msra.mxu0 0
    %344 = vmatprep.subr.bf16.mxu0 0
    %345 = vmatpush1.bf16.msra.mxu0 0
    %346 = vmatprep.subr.bf16.mxu0 0
    %347 = vmatpush1.bf16.msra.mxu0 0
    %348 = vmatprep.subr.bf16.mxu0 0
    %349 = vmatpush1.bf16.msra.mxu0 0
    %350 = vmatprep.subr.bf16.mxu0 0
    %351 = vmatpush1.bf16.msra.mxu0 0
    %352 = vmatprep.subr.bf16.mxu0 0
    %353 = vmatpush1.bf16.msra.mxu0 0
    %354 = vmatprep.subr.bf16.mxu0 0
    %355 = vmatpush1.bf16.msra.mxu0 0
    %356 = vmatprep.subr.bf16.mxu0 0
    %357 = vmatpush1.bf16.msra.mxu0 0
    %358 = vmatprep.mubr.bf16.mxu0 0
    %359 = vmatmul.mubr.bf16.gmra.mrb[0].mxu0 %v324
    %v360 = vpop.f32.mrb[0].mxu0
    %v361 = vadd.f32 %v321, %v360
    %v362 = vpop.f32.mrb[0].mxu0
    %v363 = vpop.f32.mrb[0].mxu0
    %v364 = vpop.f32.mrb[0].mxu0
    %365 = vdwg.mxu0
    %vm366 = vcmask 64512
    %v367 = vsel %vm366, %v361, -inf
    %v368 = vrot.slane %v367, 4
    %v369 = vmax.f32 %v367, %v368
    %v370 = vrot.slane %v369, 2
    %v371 = vmax.f32 %v369, %v370
    %v372 = vrot.slane %v371, 1
    %v373 = vmax.f32 %v371, %v372
    %v374 = vsub.f32 %v361, %v373
    %v375 = vmul.f32 %v374, 1.442695
    %v376 = vpow.pop %v375
    %v377 = vsel %vm366, %v376, 0.0
    %v378 = vrot.slane %v377, 4
    %v379 = vadd.f32 %v377, %v378
    %v380 = vrot.slane %v379, 2
    %v381 = vadd.f32 %v379, %v380
    %v382 = vrot.slane %v381, 1
    %v383 = vadd.f32 %v381, %v382
    %v384 = vlog2.pop %v383
    %v385 = vmul.f32 %v384, 0.6931472
    %v386 = vadd.f32 %v373, %v385
    %v387 = vld [vmem:[%s1] sm:$0x1]
    %v388 = vlaneseq
    %v389 = vshrl.u32 %v388, 7
    %v390 = vlaneseq
    %v391 = vshrl.u32 %v390, 7
    %v392 = vsub.s32 0, %v391
    %v393 = vrot.slane %v387, %v392
    %vm394 = vcmp.eq.s32.totalorder %v389, %v393
    %v395 = vsel %vm394, %v361, 0.0
    %v396 = vsel %vm366, %v395, 0.0
    %v397 = vrot.slane %v396, 4
    %v398 = vadd.f32 %v396, %v397
    %v399 = vrot.slane %v398, 2
    %v400 = vadd.f32 %v398, %v399
    %v401 = vrot.slane %v400, 1
    %v402 = vadd.f32 %v400, %v401
    %v403 = vsub.f32 %v402, %v386
    %vm404 = vcmask 57344
    %405 = vst.msk [vmem:[#allocation2] sm:$0x1] %vm404, %v403
    // Predicated region
    $region34: #{tpu_custom_call.1} parent=1 // pred_check
      _
    $region35: #{tpu_custom_call.1} parent=1 // pred_check_branch
      %407 = sbr.rel (0) target = $region37
    $region36: #{tpu_custom_call.1} parent=1 // pred_region
      %s409 = ssub.s32 16, 16
      %410 = vsyncadd [#allocation3], %s409
      %s412 = sshll.u32 [#allocation2], 4
      %s413 = int_to_ptr.vmem [resolvable:$true] %s412
      %415 = dma.vmem_to_hbm [thread:$0]  %s413, 16, %s8, [#allocation3]
    $region37: #{tpu_custom_call.1} parent=1 // pred_fallthru
      _
    // Predicated region
    $region38: #{tpu_custom_call.1} parent=1 // pred_check
      _
    $region39: #{tpu_custom_call.1} parent=1 // pred_check_branch
      %417 = sbr.rel (0) target = $region41
    $region40: #{tpu_custom_call.1} parent=1 // pred_region
      %418 = dma.done [#allocation3], 16
    $region41: #{tpu_custom_call.1} parent=1 // pred_fallthru
      _
    %419 = vsyncpa [#allocation3], 1

</llo_original>
